<compile_context>
chip_gen: v7x
topology: tpu7x:2x2x1
jax: 0.10.0
libtpu: 0.0.40
codegen_flags: <defaults>
</compile_context>

<pallas_src>
import jax
import jax.numpy as jnp
from jax.experimental import pallas as pl
from jax.experimental.pallas import tpu as pltpu

LANE = 128
SUBLANE = 8
MAX_BLOCK_ROWS = 2048  # 2048 x 128 x 4B = 1 MiB per input block (fits v5e/v6e/v7x)


def _round_up(v, m):
    return ((v + m - 1) // m) * m


def _adaptive_loss_kernel(thr_ref, total_ref, x_ref, t_ref,
                          loss_out_ref, sum_out_ref, sumsq_out_ref,
                          acc_loss, acc_sum, acc_sumsq):
    pid = pl.program_id(0)

    @pl.when(pid == 0)
    def _():
        acc_loss[...] = jnp.zeros_like(acc_loss)
        acc_sum[...] = jnp.zeros_like(acc_sum)
        acc_sumsq[...] = jnp.zeros_like(acc_sumsq)

    br, lw = x_ref.shape  # static block shape (block_rows, 128)

    x = x_ref[...].astype(jnp.float32)
    t = t_ref[...].astype(jnp.float32)

    # Validity mask built in-kernel from the global element index (no mask DMA).
    rows = jax.lax.broadcasted_iota(jnp.int32, (br, lw), 0)
    cols = jax.lax.broadcasted_iota(jnp.int32, (br, lw), 1)
    gidx = (pid * br + rows) * lw + cols
    mask = (gidx < total_ref[0]).astype(jnp.float32)

    # binary_cross_entropy_with_logits, reduction='none' (numerically stable):
    #   loss = max(x, 0) - x * t + log1p(exp(-|x|))
    loss = jnp.maximum(x, 0.0) - x * t + jnp.log1p(jnp.exp(-jnp.abs(x)))

    thr = thr_ref[0]
    # torch.clamp(v, 0, thr) == min(max(v, 0), thr)   (matches torch for thr < 0)
    clamped = jnp.minimum(jnp.maximum(loss, 0.0), thr)
    contrib = jnp.where(loss > thr, clamped, loss) * mask
    loss_m = loss * mask

    # Fold the (block_rows, 128) tiles down to (8, 128) partials with VPU adds
    # only (layout-preserving reshape: split the sublane-major axis by 8).
    r = br // SUBLANE
    acc_loss[...] += jnp.sum(contrib.reshape(r, SUBLANE, LANE), axis=0)
    acc_sum[...] += jnp.sum(loss_m.reshape(r, SUBLANE, LANE), axis=0)
    acc_sumsq[...] += jnp.sum((loss_m * loss).reshape(r, SUBLANE, LANE), axis=0)

    @pl.when(pid == pl.num_programs(0) - 1)
    def _():
        # Single cross-lane reduction per output, once, at the end.
        loss_out_ref[0, 0] = jnp.sum(acc_loss[...])
        sum_out_ref[0, 0] = jnp.sum(acc_sum[...])
        sumsq_out_ref[0, 0] = jnp.sum(acc_sumsq[...])


def _run_kernel(thr, total_arr, x2d, t2d, block_rows, num_blocks):
    out_shape = tuple(jax.ShapeDtypeStruct((1, 1), jnp.float32) for _ in range(3))
    return pl.pallas_call(
        _adaptive_loss_kernel,
        out_shape=out_shape,
        grid_spec=pltpu.PrefetchScalarGridSpec(
            num_scalar_prefetch=0,
            grid=(num_blocks,),
            in_specs=[
                # scalars resident in SMEM for the whole grid
                pl.BlockSpec(memory_space=pltpu.MemorySpace.SMEM),   # threshold
                pl.BlockSpec(memory_space=pltpu.MemorySpace.SMEM),   # total count
                # tiled, double-buffered streaming inputs (native dtype)
                pl.BlockSpec((block_rows, LANE), lambda i: (i, 0)),  # logits
                pl.BlockSpec((block_rows, LANE), lambda i: (i, 0)),  # targets
            ],
            out_specs=tuple(
                pl.BlockSpec((1, 1), lambda i: (0, 0),
                             memory_space=pltpu.MemorySpace.SMEM)
                for _ in range(3)
            ),
            scratch_shapes=[pltpu.VMEM((SUBLANE, LANE), jnp.float32)
                            for _ in range(3)],
        ),
        compiler_params=pltpu.CompilerParams(
            # Row axis is a reduction into resident accumulators -> arbitrary.
            dimension_semantics=("arbitrary",),
            vmem_limit_bytes=32 * 1024 * 1024,
        ),
    )(thr, total_arr, x2d, t2d)


def _flatten_pad(a, padded_elems):
    """Flatten in native dtype and pad only the small tail needed for tiling."""
    flat = a.reshape(-1)
    pad = padded_elems - flat.shape[0]
    if pad:
        flat = jnp.pad(flat, (0, pad))
    return flat.reshape(-1, LANE)


def adaptive_loss_forward(inp, target, running_mean, running_std,
                          n=3.0, beta=0.995, beta2=0.999, adaptive_on=True):
    """Returns (loss_final, new_running_mean, new_running_std)."""
    total = int(inp.size)
    n_rows = -(-total // LANE)
    block_rows = min(MAX_BLOCK_ROWS, _round_up(n_rows, SUBLANE))
    padded_rows = _round_up(n_rows, block_rows)
    num_blocks = padded_rows // block_rows
    padded_elems = padded_rows * LANE

    x2d = _flatten_pad(inp, padded_elems)
    t2d = _flatten_pad(target, padded_elems)

    running_mean = jnp.asarray(running_mean, jnp.float32)
    running_std = jnp.asarray(running_std, jnp.float32)
    thr_val = running_mean + jnp.float32(n) * running_std
    thr = jnp.where(adaptive_on, thr_val, jnp.float32(jnp.inf)).reshape(1)
    total_arr = jnp.array([total], dtype=jnp.int32)

    loss_final, s, ssq = _run_kernel(thr, total_arr, x2d, t2d,
                                     block_rows, num_blocks)
    loss_final = loss_final[0, 0]
    s = s[0, 0]
    ssq = ssq[0, 0]

    if not adaptive_on:
        # reduction='sum' path (everything passes an infinite threshold).
        return loss_final, running_mean, running_std

    count = jnp.float32(total)
    mean = s / count
    meansqr = ssq / count
    # Clamp against tiny negative values from fp rounding before sqrt.
    std = jnp.sqrt(jnp.maximum(meansqr - mean * mean, 0.0))

    beta = jnp.float32(beta)
    beta2 = jnp.float32(beta2)
    mean_step = jnp.minimum(mean * (1.0 - beta), running_std * 0.75)
    std_step = jnp.minimum(std * (1.0 - beta2), running_std * 0.25)
    new_mean = jnp.where(running_mean > 0,
                         running_mean * beta + mean_step,
                         mean * 1.5)
    new_std = jnp.where(running_mean > 0,
                        running_std * beta2 + std_step,
                        std)
    return loss_final, new_mean, new_std


if __name__ == "__main__":
    key = jax.random.PRNGKey(0)
    k1, k2 = jax.random.split(key)
    # Small NCHW-like logits / targets, consistent with a BCE-with-logits loss.
    x = jax.random.normal(k1, (2, 4, 16, 16), dtype=jnp.float32)
    target = jax.random.uniform(k2, (2, 4, 16, 16), dtype=jnp.float32)

    # Buffers initialized exactly as in the PyTorch __init__.
    running_mean = jnp.float32(-1.0)
    running_std = jnp.float32(-1.0)

    loss_final, new_mean, new_std = adaptive_loss_forward(
        x, target, running_mean, running_std,
        n=3.0, beta=0.995, beta2=0.999, adaptive_on=True)

    jax.block_until_ready((loss_final, new_mean, new_std))
    print("KERNEL_OK")
</pallas_src>

<mosaic_0001>
module attributes {stable_mosaic.version = 11 : i64} {
  func.func @_adaptive_loss_kernel(%arg0: i32, %arg1: memref<1xf32, #tpu.memory_space<smem>>, %arg2: memref<1xi32, #tpu.memory_space<smem>>, %arg3: memref<16x128xf32, #tpu.memory_space<vmem>>, %arg4: memref<16x128xf32, #tpu.memory_space<vmem>>, %arg5: memref<1x1xf32, #tpu.memory_space<smem>>, %arg6: memref<1x1xf32, #tpu.memory_space<smem>>, %arg7: memref<1x1xf32, #tpu.memory_space<smem>>, %arg8: memref<8x128xf32, #tpu.memory_space<vmem>>, %arg9: memref<8x128xf32, #tpu.memory_space<vmem>>, %arg10: memref<8x128xf32, #tpu.memory_space<vmem>>) attributes {dimension_semantics = [#tpu.dimension_semantics<arbitrary>], iteration_bounds = array<i64: 1>, scalar_prefetch = 0 : i64, scratch_operands = 3 : i64, tpu.core_type = #tpu.core_type<tc>, window_params = [{transform_indices = @transform_0, window_bounds = array<i64: 1>}, {transform_indices = @transform_1, window_bounds = array<i64: 1>}, {transform_indices = @transform_2, window_bounds = array<i64: 16, 128>}, {transform_indices = @transform_3, window_bounds = array<i64: 16, 128>}, {transform_indices = @transform_4, window_bounds = array<i64: 1, 1>}, {transform_indices = @transform_5, window_bounds = array<i64: 1, 1>}, {transform_indices = @transform_6, window_bounds = array<i64: 1, 1>}]} {
    %c0_i32 = arith.constant 0 : i32
    %0 = arith.cmpi eq, %arg0, %c0_i32 : i32
    %1 = arith.extui %0 : i1 to i32
    %c0_i32_0 = arith.constant 0 : i32
    %2 = arith.cmpi ne, %1, %c0_i32_0 : i32
    scf.if %2 {
      %cst_25 = arith.constant 0.000000e+00 : f32
      %57 = vector.broadcast %cst_25 : f32 to vector<8x128xf32>
      %c0_26 = arith.constant 0 : index
      %c0_27 = arith.constant 0 : index
      %58 = vector.load %arg8[%c0_26, %c0_27] : memref<8x128xf32, #tpu.memory_space<vmem>>, vector<8x128xf32>
      tpu.vector_store %arg8[%c0_26, %c0_27], %57 {strides = array<i32>} : memref<8x128xf32, #tpu.memory_space<vmem>>, vector<8x128xf32>,
      %cst_28 = arith.constant 0.000000e+00 : f32
      %59 = vector.broadcast %cst_28 : f32 to vector<8x128xf32>
      %c0_29 = arith.constant 0 : index
      %c0_30 = arith.constant 0 : index
      %60 = vector.load %arg9[%c0_29, %c0_30] : memref<8x128xf32, #tpu.memory_space<vmem>>, vector<8x128xf32>
      tpu.vector_store %arg9[%c0_29, %c0_30], %59 {strides = array<i32>} : memref<8x128xf32, #tpu.memory_space<vmem>>, vector<8x128xf32>,
      %cst_31 = arith.constant 0.000000e+00 : f32
      %61 = vector.broadcast %cst_31 : f32 to vector<8x128xf32>
      %c0_32 = arith.constant 0 : index
      %c0_33 = arith.constant 0 : index
      %62 = vector.load %arg10[%c0_32, %c0_33] : memref<8x128xf32, #tpu.memory_space<vmem>>, vector<8x128xf32>
      tpu.vector_store %arg10[%c0_32, %c0_33], %61 {strides = array<i32>} : memref<8x128xf32, #tpu.memory_space<vmem>>, vector<8x128xf32>,
    } else {
    }
    %c0 = arith.constant 0 : index
    %c0_1 = arith.constant 0 : index
    %3 = vector.load %arg3[%c0, %c0_1] : memref<16x128xf32, #tpu.memory_space<vmem>>, vector<16x128xf32>
    %c0_2 = arith.constant 0 : index
    %c0_3 = arith.constant 0 : index
    %4 = vector.load %arg4[%c0_2, %c0_3] : memref<16x128xf32, #tpu.memory_space<vmem>>, vector<16x128xf32>
    %5 = tpu.iota {dimensions = array<i32: 0>} : vector<16x128xi32>
    %6 = tpu.iota {dimensions = array<i32: 1>} : vector<16x128xi32>
    %c16_i32 = arith.constant 16 : i32
    %7 = arith.muli %arg0, %c16_i32 : i32
    %8 = vector.broadcast %7 : i32 to vector<16x128xi32>
    %9 = arith.addi %8, %5 : vector<16x128xi32>
    %c128_i32 = arith.constant 128 : i32
    %10 = vector.broadcast %c128_i32 : i32 to vector<16x128xi32>
    %11 = arith.muli %9, %10 : vector<16x128xi32>
    %12 = arith.addi %11, %6 : vector<16x128xi32>
    %c0_4 = arith.constant 0 : index
    %13 = memref.load %arg2[%c0_4] : memref<1xi32, #tpu.memory_space<smem>>
    %14 = vector.broadcast %13 : i32 to vector<16x128xi32>
    %15 = arith.cmpi slt, %12, %14 : vector<16x128xi32>
    %16 = arith.extui %15 : vector<16x128xi1> to vector<16x128xi32>
    %17 = arith.sitofp %16 : vector<16x128xi32> to vector<16x128xf32>
    %cst = arith.constant 0.000000e+00 : f32
    %18 = vector.broadcast %cst : f32 to vector<16x128xf32>
    %19 = arith.maximumf %3, %18 : vector<16x128xf32>
    %20 = arith.mulf %3, %4 : vector<16x128xf32>
    %21 = arith.subf %19, %20 : vector<16x128xf32>
    %22 = math.absf %3 : vector<16x128xf32>
    %cst_5 = arith.constant 0.000000e+00 : f32
    %23 = vector.broadcast %cst_5 : f32 to vector<16x128xf32>
    %24 = arith.subf %23, %22 : vector<16x128xf32>
    %25 = math.exp %24 : vector<16x128xf32>
    %26 = math.log1p %25 : vector<16x128xf32>
    %27 = arith.addf %21, %26 : vector<16x128xf32>
    %c0_6 = arith.constant 0 : index
    %28 = memref.load %arg1[%c0_6] : memref<1xf32, #tpu.memory_space<smem>>
    %cst_7 = arith.constant 0.000000e+00 : f32
    %29 = vector.broadcast %cst_7 : f32 to vector<16x128xf32>
    %30 = arith.maximumf %27, %29 : vector<16x128xf32>
    %31 = vector.broadcast %28 : f32 to vector<16x128xf32>
    %32 = arith.minimumf %30, %31 : vector<16x128xf32>
    %33 = vector.broadcast %28 : f32 to vector<16x128xf32>
    %34 = arith.cmpf ogt, %27, %33 : vector<16x128xf32>
    %35 = arith.select %34, %32, %27 : vector<16x128xi1>, vector<16x128xf32>
    %36 = arith.mulf %35, %17 : vector<16x128xf32>
    %37 = arith.mulf %27, %17 : vector<16x128xf32>
    %c0_8 = arith.constant 0 : index
    %c0_9 = arith.constant 0 : index
    %38 = vector.load %arg8[%c0_8, %c0_9] : memref<8x128xf32, #tpu.memory_space<vmem>>, vector<8x128xf32>
    %39 = vector.shape_cast %36 : vector<16x128xf32> to vector<2x8x128xf32>
    %cst_10 = arith.constant dense<0.000000e+00> : vector<8x128xf32>
    %40 = vector.multi_reduction <add>, %39, %cst_10 [0] : vector<2x8x128xf32> to vector<8x128xf32>
    %41 = arith.addf %38, %40 : vector<8x128xf32>
    %c0_11 = arith.constant 0 : index
    %c0_12 = arith.constant 0 : index
    %42 = vector.load %arg8[%c0_11, %c0_12] : memref<8x128xf32, #tpu.memory_space<vmem>>, vector<8x128xf32>
    tpu.vector_store %arg8[%c0_11, %c0_12], %41 {strides = array<i32>} : memref<8x128xf32, #tpu.memory_space<vmem>>, vector<8x128xf32>,
    %c0_13 = arith.constant 0 : index
    %c0_14 = arith.constant 0 : index
    %43 = vector.load %arg9[%c0_13, %c0_14] : memref<8x128xf32, #tpu.memory_space<vmem>>, vector<8x128xf32>
    %44 = vector.shape_cast %37 : vector<16x128xf32> to vector<2x8x128xf32>
    %cst_15 = arith.constant dense<0.000000e+00> : vector<8x128xf32>
    %45 = vector.multi_reduction <add>, %44, %cst_15 [0] : vector<2x8x128xf32> to vector<8x128xf32>
    %46 = arith.addf %43, %45 : vector<8x128xf32>
    %c0_16 = arith.constant 0 : index
    %c0_17 = arith.constant 0 : index
    %47 = vector.load %arg9[%c0_16, %c0_17] : memref<8x128xf32, #tpu.memory_space<vmem>>, vector<8x128xf32>
    tpu.vector_store %arg9[%c0_16, %c0_17], %46 {strides = array<i32>} : memref<8x128xf32, #tpu.memory_space<vmem>>, vector<8x128xf32>,
    %c0_18 = arith.constant 0 : index
    %c0_19 = arith.constant 0 : index
    %48 = vector.load %arg10[%c0_18, %c0_19] : memref<8x128xf32, #tpu.memory_space<vmem>>, vector<8x128xf32>
    %49 = arith.mulf %37, %27 : vector<16x128xf32>
    %50 = vector.shape_cast %49 : vector<16x128xf32> to vector<2x8x128xf32>
    %cst_20 = arith.constant dense<0.000000e+00> : vector<8x128xf32>
    %51 = vector.multi_reduction <add>, %50, %cst_20 [0] : vector<2x8x128xf32> to vector<8x128xf32>
    %52 = arith.addf %48, %51 : vector<8x128xf32>
    %c0_21 = arith.constant 0 : index
    %c0_22 = arith.constant 0 : index
    %53 = vector.load %arg10[%c0_21, %c0_22] : memref<8x128xf32, #tpu.memory_space<vmem>>, vector<8x128xf32>
    tpu.vector_store %arg10[%c0_21, %c0_22], %52 {strides = array<i32>} : memref<8x128xf32, #tpu.memory_space<vmem>>, vector<8x128xf32>,
    %c0_i32_23 = arith.constant 0 : i32
    %54 = arith.cmpi eq, %arg0, %c0_i32_23 : i32
    %55 = arith.extui %54 : i1 to i32
    %c0_i32_24 = arith.constant 0 : i32
    %56 = arith.cmpi ne, %55, %c0_i32_24 : i32
    scf.if %56 {
      %c0_25 = arith.constant 0 : index
      %c0_26 = arith.constant 0 : index
      %57 = vector.load %arg8[%c0_25, %c0_26] : memref<8x128xf32, #tpu.memory_space<vmem>>, vector<8x128xf32>
      %58 = vector.shape_cast %57 : vector<8x128xf32> to vector<1x8x128xf32>
      %cst_27 = arith.constant dense<0.000000e+00> : vector<1xf32>
      %59 = vector.multi_reduction <add>, %58, %cst_27 [1, 2] : vector<1x8x128xf32> to vector<1xf32>
      %60 = vector.shape_cast %59 : vector<1xf32> to vector<1x1x1xf32>
      %61 = vector.extract %60[0, 0, 0] : f32 from vector<1x1x1xf32>
      %c0_28 = arith.constant 0 : index
      %c0_29 = arith.constant 0 : index
      %62 = memref.load %arg5[%c0_28, %c0_29] : memref<1x1xf32, #tpu.memory_space<smem>>
      memref.store %61, %arg5[%c0_28, %c0_29] : memref<1x1xf32, #tpu.memory_space<smem>>
      %c0_30 = arith.constant 0 : index
      %c0_31 = arith.constant 0 : index
      %63 = vector.load %arg9[%c0_30, %c0_31] : memref<8x128xf32, #tpu.memory_space<vmem>>, vector<8x128xf32>
      %64 = vector.shape_cast %63 : vector<8x128xf32> to vector<1x8x128xf32>
      %cst_32 = arith.constant dense<0.000000e+00> : vector<1xf32>
      %65 = vector.multi_reduction <add>, %64, %cst_32 [1, 2] : vector<1x8x128xf32> to vector<1xf32>
      %66 = vector.shape_cast %65 : vector<1xf32> to vector<1x1x1xf32>
      %67 = vector.extract %66[0, 0, 0] : f32 from vector<1x1x1xf32>
      %c0_33 = arith.constant 0 : index
      %c0_34 = arith.constant 0 : index
      %68 = memref.load %arg6[%c0_33, %c0_34] : memref<1x1xf32, #tpu.memory_space<smem>>
      memref.store %67, %arg6[%c0_33, %c0_34] : memref<1x1xf32, #tpu.memory_space<smem>>
      %c0_35 = arith.constant 0 : index
      %c0_36 = arith.constant 0 : index
      %69 = vector.load %arg10[%c0_35, %c0_36] : memref<8x128xf32, #tpu.memory_space<vmem>>, vector<8x128xf32>
      %70 = vector.shape_cast %69 : vector<8x128xf32> to vector<1x8x128xf32>
      %cst_37 = arith.constant dense<0.000000e+00> : vector<1xf32>
      %71 = vector.multi_reduction <add>, %70, %cst_37 [1, 2] : vector<1x8x128xf32> to vector<1xf32>
      %72 = vector.shape_cast %71 : vector<1xf32> to vector<1x1x1xf32>
      %73 = vector.extract %72[0, 0, 0] : f32 from vector<1x1x1xf32>
      %c0_38 = arith.constant 0 : index
      %c0_39 = arith.constant 0 : index
      %74 = memref.load %arg7[%c0_38, %c0_39] : memref<1x1xf32, #tpu.memory_space<smem>>
      memref.store %73, %arg7[%c0_38, %c0_39] : memref<1x1xf32, #tpu.memory_space<smem>>
    } else {
    }
    return
  }
  func.func @transform_0(%arg0: i32) -> i32 {
    %c0_i32 = arith.constant 0 : i32
    %c0_i32_0 = arith.constant 0 : i32
    return %c0_i32 : i32
  }
  func.func @transform_1(%arg0: i32) -> i32 {
    %c0_i32 = arith.constant 0 : i32
    %c0_i32_0 = arith.constant 0 : i32
    return %c0_i32 : i32
  }
  func.func @transform_2(%arg0: i32) -> (i32, i32) {
    %c0_i32 = arith.constant 0 : i32
    %c0_i32_0 = arith.constant 0 : i32
    return %arg0, %c0_i32 : i32, i32
  }
  func.func @transform_3(%arg0: i32) -> (i32, i32) {
    %c0_i32 = arith.constant 0 : i32
    %c0_i32_0 = arith.constant 0 : i32
    return %arg0, %c0_i32 : i32, i32
  }
  func.func @transform_4(%arg0: i32) -> (i32, i32) {
    %c0_i32 = arith.constant 0 : i32
    %c0_i32_0 = arith.constant 0 : i32
    %c0_i32_1 = arith.constant 0 : i32
    return %c0_i32, %c0_i32_0 : i32, i32
  }
  func.func @transform_5(%arg0: i32) -> (i32, i32) {
    %c0_i32 = arith.constant 0 : i32
    %c0_i32_0 = arith.constant 0 : i32
    %c0_i32_1 = arith.constant 0 : i32
    return %c0_i32, %c0_i32_0 : i32, i32
  }
  func.func @transform_6(%arg0: i32) -> (i32, i32) {
    %c0_i32 = arith.constant 0 : i32
    %c0_i32_0 = arith.constant 0 : i32
    %c0_i32_1 = arith.constant 0 : i32
    return %c0_i32, %c0_i32_0 : i32, i32
  }
}

</mosaic_0001>

<llo_original>
// kernel: tpu_custom_call.1
$region0: #{tpu_custom_call.1}
  #allocation0 [shape = 'u32[]', space=smem, size = 0x4, offset = 0x4, fixed_abs, tag = 'smem constant byte address 0x4 - core index']
  #allocation1 [shape = 'u32[144,128]{1,0:T(1,128)}', space=vmem, size = 0x12000, scoped, tag = 'internal scratch']
  #allocation2 [shape = 'f32[8,128]{1,0:T(8,128)}', space=vmem, size = 0x1000, scoped, tag = 'scratch operand']
  #allocation3 [shape = 'f32[8,128]{1,0:T(8,128)}', space=vmem, size = 0x1000, scoped, tag = 'scratch operand']
  #allocation4 [shape = 'f32[8,128]{1,0:T(8,128)}', space=vmem, size = 0x1000, scoped, tag = 'scratch operand']
  #allocation5 [shape = 'f32[1]{0:T(128)S(6)}', space=smem, size = 0x200, scoped, tag = 'scoped memory for tpu_custom_call.1']
  #allocation6 [shape = 's32[1]{0:T(128)S(6)}', space=smem, size = 0x200, scoped, tag = 'scoped memory for tpu_custom_call.1']
  %s0 = inlined_call_operand.<no memory space> [shape: f32[1], index: 0, kind: input, shape index: {}]
  %s1 = inlined_call_operand.<no memory space> [shape: s32[1], index: 1, kind: input, shape index: {}]
  %s2 = inlined_call_operand.hbm [shape: f32[16,128], index: 2, kind: input, shape index: {}]
  %s3 = inlined_call_operand.hbm [shape: f32[16,128], index: 3, kind: input, shape index: {}]
  %s4 = inlined_call_operand.hbm [shape: f32[1,1], index: 4, kind: output, shape index: {0}]
  %s5 = inlined_call_operand.hbm [shape: f32[1,1], index: 5, kind: output, shape index: {1}]
  %s6 = inlined_call_operand.hbm [shape: f32[1,1], index: 6, kind: output, shape index: {2}]
  %7 = xla_tuple %s4, %s5, %s6
  %s8 = sld [smem:[#allocation0]]
  $region58: #{tpu_custom_call.1} parent=0
    _
  %s10 = ssub.s32 1, %s8
  %s11 = scalar_select 0, %s10, %s8
  %12 = sst [smem:[#allocation5]] %s0
  %13 = sst [smem:[#allocation6]] %s1
  $region1: #{tpu_custom_call.1} parent=0
    #allocation7 [shape = 'u8[8192]{0}', space=vmem, size = 0x2000, scoped, tag = 'input window, operand 2, single buffered']
    #allocation8 [shape = 's32[1]{0}', space=sflag, size = 0x4, scoped, tag = 'scoped memory for tpu_custom_call.1']
    #allocation9 [shape = 's32[1]{0}', space=sflag, size = 0x4, scoped, tag = 'scoped memory for tpu_custom_call.1']
    #allocation10 [shape = 'u8[8192]{0}', space=vmem, size = 0x2000, scoped, tag = 'input window, operand 3, single buffered']
    #allocation11 [shape = 's32[1]{0}', space=sflag, size = 0x4, scoped, tag = 'scoped memory for tpu_custom_call.1']
    #allocation12 [shape = 'u8[512]{0}', space=smem, size = 0x200, scoped, tag = 'output window, operand 0, single buffered']
    #allocation13 [shape = 'u8[512]{0}', space=smem, size = 0x200, scoped, tag = 'output window, operand 1, single buffered']
    #allocation14 [shape = 's32[1]{0}', space=sflag, size = 0x4, scoped, tag = 'scoped memory for tpu_custom_call.1']
    #allocation15 [shape = 'u8[512]{0}', space=smem, size = 0x200, scoped, tag = 'output window, operand 2, single buffered']
    %14 = vsyncpa [#allocation8], 0
    %15 = vsyncpa [#allocation11], 0
    %16 = vsyncpa [#allocation9], 0
    %17 = vsyncpa [#allocation14], 0
    // Predicated region
    $region2: #{tpu_custom_call.1} parent=1 // pred_check
      _
    $region3: #{tpu_custom_call.1} parent=1 // pred_check_branch
      %19 = sbr.rel (0) target = $region5
    $region4: #{tpu_custom_call.1} parent=1 // pred_region
      _
    $region5: #{tpu_custom_call.1} parent=1 // pred_fallthru
      _
    // Predicated region
    $region6: #{tpu_custom_call.1} parent=1 // pred_check
      _
    $region7: #{tpu_custom_call.1} parent=1 // pred_check_branch
      %21 = sbr.rel (0) target = $region9
    $region8: #{tpu_custom_call.1} parent=1 // pred_region
      _
    $region9: #{tpu_custom_call.1} parent=1 // pred_fallthru
      _
    // Predicated region
    $region10: #{tpu_custom_call.1} parent=1 // pred_check
      _
    $region11: #{tpu_custom_call.1} parent=1 // pred_check_branch
      %23 = sbr.rel (0) target = $region13
    $region12: #{tpu_custom_call.1} parent=1 // pred_region
      %s25 = ssub.s32 256, 256
      %26 = vsyncadd [#allocation8], %s25
      %s27 = sshll.u32 [#allocation7], 4
      %s28 = int_to_ptr.vmem [resolvable:$true] %s27
      %33 = dma.hbm_to_vmem [thread:$0]  %s2, 256, %s28, [#allocation8], 128, 128, 8
    $region13: #{tpu_custom_call.1} parent=1 // pred_fallthru
      _
    // Predicated region
    $region14: #{tpu_custom_call.1} parent=1 // pred_check
      _
    $region15: #{tpu_custom_call.1} parent=1 // pred_check_branch
      %35 = sbr.rel (0) target = $region17
    $region16: #{tpu_custom_call.1} parent=1 // pred_region
      %s37 = ssub.s32 256, 256
      %38 = vsyncadd [#allocation11], %s37
      %s39 = sshll.u32 [#allocation10], 4
      %s40 = int_to_ptr.vmem [resolvable:$true] %s39
      %45 = dma.hbm_to_vmem [thread:$0]  %s3, 256, %s40, [#allocation11], 128, 128, 8
    $region17: #{tpu_custom_call.1} parent=1 // pred_fallthru
      _
    // Predicated region
    $region18: #{tpu_custom_call.1} parent=1 // pred_check
      _
    $region19: #{tpu_custom_call.1} parent=1 // pred_check_branch
      %47 = sbr.rel (0) target = $region21
    $region20: #{tpu_custom_call.1} parent=1 // pred_region
      %48 = dma.done [#allocation8], 256
    $region21: #{tpu_custom_call.1} parent=1 // pred_fallthru
      _
    // Predicated region
    $region22: #{tpu_custom_call.1} parent=1 // pred_check
      _
    $region23: #{tpu_custom_call.1} parent=1 // pred_check_branch
      %50 = sbr.rel (0) target = $region25
    $region24: #{tpu_custom_call.1} parent=1 // pred_region
      %51 = dma.done [#allocation11], 256
    $region25: #{tpu_custom_call.1} parent=1 // pred_fallthru
      _
    %p52 = scmp.eq.s32.totalorder 0, 0
    // Predicated region
    $region26: #{tpu_custom_call.1} parent=1 // pred_check
      %p53 = pneg %p52
    $region27: #{tpu_custom_call.1} parent=1 // pred_check_branch
      %55 = sbr.rel (%p53) target = $region29
    $region28: #{tpu_custom_call.1} parent=1 // pred_region
      %56 = vst [vmem:[#allocation2] sm:$0xff] 0.0
      %57 = vst [vmem:[#allocation3] sm:$0xff] 0.0
      %58 = vst [vmem:[#allocation4] sm:$0xff] 0.0
    $region29: #{tpu_custom_call.1} parent=1 // pred_fallthru
      _
    %v59 = vld [vmem:[#allocation7] sm:$0xff]
    %v60 = vld [vmem:[#allocation7 + $0x8] sm:$0xff]
    %v61 = vld [vmem:[#allocation10] sm:$0xff]
    %v62 = vld [vmem:[#allocation10 + $0x8] sm:$0xff]
    %v63 = vlaneseq
    %v64 = vshrl.u32 %v63, 7
    %v65 = vadd.s32 %v64, 8
    %v66 = vlaneseq
    %v67 = vand.u32 %v66, 127
    %s68 = smul.u32 0, 16
    %v69 = vstv %s68
    %v70 = vadd.s32 %v69, %v64
    %v71 = vadd.s32 %v69, %v65
    %v72 = vmul.u32 %v70, 128
    %v73 = vmul.u32 %v71, 128
    %v74 = vadd.s32 %v72, %v67
    %v75 = vadd.s32 %v73, %v67
    %s76 = sld [smem:[#allocation6]]
    %v77 = vstv %s76
    %vm78 = vcmp.lt.s32.totalorder %v74, %v77
    %vm79 = vcmp.lt.s32.totalorder %v75, %v77
    %v80 = vsel %vm78, 1, 0
    %v81 = vsel %vm79, 1, 0
    %v82 = vcvt.s32.f32 %v80
    %v83 = vcvt.s32.f32 %v81
    %v84 = vmax.f32 %v59, 0.0
    %v85 = vmax.f32 %v60, 0.0
    %v86 = vmul.f32 %v59, %v61
    %v87 = vmul.f32 %v60, %v62
    %v88 = vsub.f32 %v84, %v86
    %v89 = vsub.f32 %v85, %v87
    %v90 = vand.u32 2147483647, %v59
    %v91 = vand.u32 2147483647, %v60
    %v92 = vsub.f32 0.0, %v90
    %v93 = vsub.f32 0.0, %v91
    %v94 = vmul.f32 %v92, 1.442695
    %v95 = vpow.pop %v94
    %v96 = vmul.f32 %v93, 1.442695
    %v97 = vpow.pop %v96
    %v98 = vadd.f32 %v95, 1.0
    %v99 = vlog2.pop %v98
    %v100 = vmul.f32 %v99, 0.6931472
    %v101 = vmul.f32 -0.5, %v95
    %v102 = vadd.f32 %v101, 1.0
    %v103 = vmul.f32 %v102, %v95
    %v104 = vand.u32 2147483647, %v95
    %vm105 = vcmp.lt.f32.partialorder %v104, 0.0004427343
    %v106 = vsel %vm105, %v103, %v100
    %v107 = vadd.f32 %v97, 1.0
    %v108 = vlog2.pop %v107
    %v109 = vmul.f32 %v108, 0.6931472
    %v110 = vmul.f32 -0.5, %v97
    %v111 = vadd.f32 %v110, 1.0
    %v112 = vmul.f32 %v111, %v97
    %v113 = vand.u32 2147483647, %v97
    %vm114 = vcmp.lt.f32.partialorder %v113, 0.0004427343
    %v115 = vsel %vm114, %v112, %v109
    %v116 = vadd.f32 %v88, %v106
    %v117 = vadd.f32 %v89, %v115
    %s118 = sld [smem:[#allocation5]]
    %v119 = vmax.f32 %v116, 0.0
    %v120 = vmax.f32 %v117, 0.0
    %v121 = vstv %s118
    %v122 = vmin.f32 %v119, %v121
    %v123 = vmin.f32 %v120, %v121
    %vm124 = vcmp.gt.f32.partialorder %v116, %v121
    %vm125 = vcmp.gt.f32.partialorder %v117, %v121
    %v126 = vsel %vm124, %v122, %v116
    %v127 = vsel %vm125, %v123, %v117
    %v128 = vmul.f32 %v126, %v82
    %v129 = vmul.f32 %v127, %v83
    %v130 = vmul.f32 %v116, %v82
    %v131 = vmul.f32 %v117, %v83
    %v132 = vld [vmem:[#allocation2] sm:$0xff]
    %v133 = vadd.f32 %v128, %v129
    %v134 = vadd.f32 %v132, %v133
    %135 = vst [vmem:[#allocation2] sm:$0xff] %v134
    %v136 = vld [vmem:[#allocation3] sm:$0xff]
    %v137 = vadd.f32 %v130, %v131
    %v138 = vadd.f32 %v136, %v137
    %139 = vst [vmem:[#allocation3] sm:$0xff] %v138
    %v140 = vld [vmem:[#allocation4] sm:$0xff]
    %v141 = vmul.f32 %v130, %v116
    %v142 = vmul.f32 %v131, %v117
    %v143 = vadd.f32 %v141, %v142
    %v144 = vadd.f32 %v140, %v143
    %145 = vst [vmem:[#allocation4] sm:$0xff] %v144
    // Predicated region
    $region30: #{tpu_custom_call.1} parent=1 // pred_check
      %p146 = pneg %p52
    $region31: #{tpu_custom_call.1} parent=1 // pred_check_branch
      %148 = sbr.rel (%p146) target = $region33
    $region32: #{tpu_custom_call.1} parent=1 // pred_region
      %v149 = vld [vmem:[#allocation2] sm:$0xff]
      %150 = vadd.xlane.f32.xlu0 %v149
      %v151 = vpop.xlane.xlu0 %150
      %v152 = vrot.slane %v151, 4
      %v153 = vadd.f32 %v151, %v152
      %v154 = vrot.slane %v153, 2
      %v155 = vadd.f32 %v153, %v154
      %v156 = vrot.slane %v155, 1
      %v157 = vadd.f32 %v155, %v156
      %s158 = vtos %v157
      %s159 = scalar_lea.smem [#allocation12], 0
      %160 = sst [smem:[%s159]] %s158
      %v161 = vld [vmem:[#allocation3] sm:$0xff]
      %162 = vadd.xlane.f32.xlu0 %v161
      %v163 = vpop.xlane.xlu0 %162
      %v164 = vrot.slane %v163, 4
      %v165 = vadd.f32 %v163, %v164
      %v166 = vrot.slane %v165, 2
      %v167 = vadd.f32 %v165, %v166
      %v168 = vrot.slane %v167, 1
      %v169 = vadd.f32 %v167, %v168
      %s170 = vtos %v169
      %s171 = scalar_lea.smem [#allocation13], 0
      %172 = sst [smem:[%s171]] %s170
      %v173 = vld [vmem:[#allocation4] sm:$0xff]
      %174 = vadd.xlane.f32.xlu0 %v173
      %v175 = vpop.xlane.xlu0 %174
      %v176 = vrot.slane %v175, 4
      %v177 = vadd.f32 %v175, %v176
      %v178 = vrot.slane %v177, 2
      %v179 = vadd.f32 %v177, %v178
      %v180 = vrot.slane %v179, 1
      %v181 = vadd.f32 %v179, %v180
      %s182 = vtos %v181
      %s183 = scalar_lea.smem [#allocation15], 0
      %184 = sst [smem:[%s183]] %s182
    $region33: #{tpu_custom_call.1} parent=1 // pred_fallthru
      _
    // Predicated region
    $region34: #{tpu_custom_call.1} parent=1 // pred_check
      _
    $region35: #{tpu_custom_call.1} parent=1 // pred_check_branch
      %186 = sbr.rel (0) target = $region37
    $region36: #{tpu_custom_call.1} parent=1 // pred_region
      %s188 = ssub.s32 16, 16
      %189 = vsyncadd [#allocation9], %s188
      %192 = dma.smem_to_hbm [#allocation12], 16, %s4, [#allocation9]
    $region37: #{tpu_custom_call.1} parent=1 // pred_fallthru
      _
    // Predicated region
    $region38: #{tpu_custom_call.1} parent=1 // pred_check
      _
    $region39: #{tpu_custom_call.1} parent=1 // pred_check_branch
      %194 = sbr.rel (0) target = $region41
    $region40: #{tpu_custom_call.1} parent=1 // pred_region
      %s196 = ssub.s32 16, 16
      %197 = vsyncadd [#allocation14], %s196
      %200 = dma.smem_to_hbm [#allocation13], 16, %s5, [#allocation14]
    $region41: #{tpu_custom_call.1} parent=1 // pred_fallthru
      _
    // Predicated region
    $region42: #{tpu_custom_call.1} parent=1 // pred_check
      _
    $region43: #{tpu_custom_call.1} parent=1 // pred_check_branch
      %202 = sbr.rel (0) target = $region45
    $region44: #{tpu_custom_call.1} parent=1 // pred_region
      %s204 = ssub.s32 16, 16
      %205 = vsyncadd [#allocation14], %s204
      %208 = dma.smem_to_hbm [#allocation15], 16, %s6, [#allocation14]
    $region45: #{tpu_custom_call.1} parent=1 // pred_fallthru
      _
    // Predicated region
    $region46: #{tpu_custom_call.1} parent=1 // pred_check
      _
    $region47: #{tpu_custom_call.1} parent=1 // pred_check_branch
      %210 = sbr.rel (0) target = $region49
    $region48: #{tpu_custom_call.1} parent=1 // pred_region
      %211 = dma.done [#allocation9], 16
    $region49: #{tpu_custom_call.1} parent=1 // pred_fallthru
      _
    // Predicated region
    $region50: #{tpu_custom_call.1} parent=1 // pred_check
      _
    $region51: #{tpu_custom_call.1} parent=1 // pred_check_branch
      %213 = sbr.rel (0) target = $region53
    $region52: #{tpu_custom_call.1} parent=1 // pred_region
      %214 = dma.done [#allocation14], 16
    $region53: #{tpu_custom_call.1} parent=1 // pred_fallthru
      _
    // Predicated region
    $region54: #{tpu_custom_call.1} parent=1 // pred_check
      _
    $region55: #{tpu_custom_call.1} parent=1 // pred_check_branch
      %216 = sbr.rel (0) target = $region57
    $region56: #{tpu_custom_call.1} parent=1 // pred_region
      %217 = dma.done [#allocation14], 16
    $region57: #{tpu_custom_call.1} parent=1 // pred_fallthru
      _
    %218 = sfence
    %219 = vsyncpa [#allocation8], 1
    %220 = vsyncpa [#allocation11], 1
    %221 = vsyncpa [#allocation9], 1
    %222 = vsyncpa [#allocation14], 1

</llo_original>
